<compile_context>
chip_gen: v6e
topology: v6e:2x2x1
jax: 0.10.0
libtpu: 0.0.40
codegen_flags: <defaults>
</compile_context>

<pallas_src>
import functools

import jax
import jax.numpy as jnp
from jax.experimental import pallas as pl
from jax.experimental.pallas import tpu as pltpu

BN_EPS = 1e-5
LANE = 128
SUBLANE = 8
NEG_FILL = -1e9  # large-negative (not -inf) logit for padded action columns


def _round_up(x, m):
    return ((x + m - 1) // m) * m


def _tensorcores_per_chip():
    """2 on v7x (so the parallel grid axis can shard across TCs), else 1."""
    try:
        kind = jax.devices()[0].device_kind.lower()
    except Exception:
        return 1
    return 2 if "v7" in kind else 1


def _resident_spec(shape):
    """Full-array, constant-index block spec; single-buffered (fetched once)."""
    try:
        return pl.BlockSpec(shape, lambda i: (0, 0), pipeline_mode=pl.Buffered(1))
    except TypeError:  # older jax without the pipeline_mode kwarg: fall back to default
        return pl.BlockSpec(shape, lambda i: (0, 0))


def _make_kernel(num_layers):
    """Fused (BN-folded) MLP + log_softmax kernel for `num_layers` Linear layers."""

    def kernel(*refs):
        # refs = [x, w1, b1, ..., wL, bL, out]
        x_ref = refs[0]
        layer_refs = refs[1:1 + 2 * num_layers]
        out_ref = refs[1 + 2 * num_layers]

        h = x_ref[...]  # bf16 activations straight from HBM; no f32 round-trip.

        for li in range(num_layers):
            w = layer_refs[2 * li][...]          # bf16 weights, lane-padded
            b = layer_refs[2 * li + 1][...]      # f32 bias, lane-padded (NEG_FILL on last)
            # bf16 x bf16 -> f32 accumulation on the MXU; bias add stays f32.
            z = jnp.dot(h, w, preferred_element_type=jnp.float32) + b
            if li != num_layers - 1:
                # ReLU in f32, then immediately narrow to the matmul dtype so the live
                # inter-layer activation is bf16 (halves vreg/VMEM pressure at large tb).
                h = jnp.maximum(z, 0.0).astype(w.dtype)
            else:
                h = z                            # f32 logits for the softmax

        # Numerically-stable log_softmax over the (lane-padded) action axis.
        # Padded columns have logits ~= NEG_FILL, so exp underflows to 0.
        m = jnp.max(h, axis=-1, keepdims=True)
        shifted = h - m
        lse = jnp.log(jnp.sum(jnp.exp(shifted), axis=-1, keepdims=True))
        out_ref[...] = (shifted - lse).astype(out_ref.dtype)

    return kernel


def init_params(key, state_shape, mlp_layers):
    """Deterministic parameter init (Xavier-uniform weights, zero biases, BN stats)."""
    in_dim = 1
    for d in state_shape:
        in_dim *= d
    layer_dims = [in_dim] + list(mlp_layers)

    keys = jax.random.split(key, len(layer_dims))
    params = {}

    # BatchNorm1d parameters (inference mode). Non-trivial running mean to exercise math.
    params["bn_gamma"] = jnp.ones((1, in_dim), jnp.float32)
    params["bn_beta"] = jnp.zeros((1, in_dim), jnp.float32)
    params["bn_mean"] = 0.1 * jax.random.normal(keys[0], (1, in_dim), jnp.float32)
    params["bn_var"] = jnp.ones((1, in_dim), jnp.float32)

    weights = []
    for i in range(len(layer_dims) - 1):
        fan_in, fan_out = layer_dims[i], layer_dims[i + 1]
        limit = (6.0 / (fan_in + fan_out)) ** 0.5
        w = jax.random.uniform(keys[i + 1], (fan_in, fan_out), jnp.float32,
                               minval=-limit, maxval=limit)
        b = jnp.zeros((1, fan_out), jnp.float32)
        weights.append((w, b))
    params["layers"] = weights
    return params


def prepare_inference_params(params, *, lane=LANE, neg_fill=NEG_FILL,
                             weight_dtype=jnp.bfloat16):
    """Host-side prep: fold BN into the first Linear, pad widths to `lane`, cast weights.

    Returns a flat list [w1, b1, w2, b2, ...] ready for the kernel.
    Padding is exact: zero weight columns/rows and zero biases for hidden padding,
    large-negative f32 biases for padded action columns (so they get ~0 probability).
    """
    scale = params["bn_gamma"][0] * jax.lax.rsqrt(params["bn_var"][0] + BN_EPS)
    shift = params["bn_beta"][0] - params["bn_mean"][0] * scale

    layers = list(params["layers"])
    w0, b0 = layers[0]
    layers[0] = (scale[:, None] * w0, b0 + shift[None, :] @ w0)

    num_layers = len(layers)
    flat = []
    prev_pad = layers[0][0].shape[0]  # input feature dim (unpadded; matches x)
    for i, (w, b) in enumerate(layers):
        fan_in, fan_out = w.shape
        out_pad = _round_up(fan_out, lane)
        w_p = jnp.zeros((prev_pad, out_pad), jnp.float32)
        w_p = w_p.at[:fan_in, :fan_out].set(w)
        fill = neg_fill if i == num_layers - 1 else 0.0
        b_p = jnp.full((1, out_pad), fill, jnp.float32)
        b_p = b_p.at[:, :fan_out].set(b)
        flat.extend([w_p.astype(weight_dtype), b_p])   # biases stay f32 (NEG_FILL path)
        prev_pad = out_pad
    return flat


@functools.partial(jax.jit,
                   static_argnames=("num_actions", "block_batch", "out_dtype"))
def average_policy_forward(s, *layer_params, num_actions, block_batch=1024,
                           out_dtype=jnp.float32):
    """s: (batch, *state_shape) -> (batch, num_actions) log-probs.

    layer_params: flat [w1, b1, ..., wL, bL] from prepare_inference_params (BN folded,
    lane-padded, bf16 weights / f32 biases).
    """
    batch = s.shape[0]
    compute_dtype = layer_params[0].dtype
    # nn.Flatten() + host-side cast to the matmul dtype (halves input HBM traffic).
    x = s.reshape(batch, -1).astype(compute_dtype)
    d = x.shape[1]
    num_layers = len(layer_params) // 2
    a_pad = layer_params[-2].shape[1]             # lane-padded action dim

    # Batch tile: large (amortizes ~0.35 us/step grid overhead), multiple of 8 sublanes,
    # and on v7x capped at ceil(batch/2) so the parallel grid axis has >= 2 steps.
    n_tc = _tensorcores_per_chip()
    tb = min(block_batch, _round_up(pl.cdiv(batch, n_tc), SUBLANE))
    tb = _round_up(max(tb, SUBLANE), SUBLANE)
    b_pad = _round_up(batch, tb)
    if b_pad != batch:
        x = jnp.pad(x, ((0, b_pad - batch), (0, 0)))

    in_specs = [pl.BlockSpec((tb, d), lambda i: (i, 0))]
    for p in layer_params:
        # Constant index_map + single buffer: weights/biases fetched once, VMEM-resident.
        in_specs.append(_resident_spec(p.shape))
    out_spec = pl.BlockSpec((tb, a_pad), lambda i: (i, 0))

    out = pl.pallas_call(
        _make_kernel(num_layers),
        out_shape=jax.ShapeDtypeStruct((b_pad, a_pad), out_dtype),
        grid_spec=pltpu.PrefetchScalarGridSpec(
            num_scalar_prefetch=0,
            grid=(b_pad // tb,),
            in_specs=in_specs,
            out_specs=out_spec,
        ),
        compiler_params=pltpu.CompilerParams(
            dimension_semantics=("parallel",)),
    )(x, *layer_params)

    return out[:batch, :num_actions]


def reference_forward(s, params):
    """Pure-JAX f32 reference implementing the original module math (eval mode)."""
    x = s.reshape(s.shape[0], -1)
    h = (x - params["bn_mean"]) / jnp.sqrt(params["bn_var"] + BN_EPS)
    h = h * params["bn_gamma"] + params["bn_beta"]
    n = len(params["layers"])
    for i, (w, b) in enumerate(params["layers"]):
        h = h @ w + b
        if i != n - 1:
            h = jnp.maximum(h, 0.0)
    return jax.nn.log_softmax(h, axis=-1)


if __name__ == "__main__":
    # Small, module-consistent shapes:
    #   state_shape = [4, 16] -> flattened D = 64; mlp_layers = [32, 32, 4]; batch = 8
    batch = 8
    state_shape = [4, 16]
    mlp_layers = [32, 32, 4]
    num_actions = mlp_layers[-1]

    key = jax.random.PRNGKey(0)
    k_params, k_input = jax.random.split(key)

    params = init_params(k_params, state_shape, mlp_layers)
    s = jax.random.normal(k_input, (batch, *state_shape), jnp.float32)

    flat_layer_params = prepare_inference_params(params)

    # Default path: f32 log-prob output, tight checks.
    out = average_policy_forward(s, *flat_layer_params, num_actions=num_actions)
    out = jax.block_until_ready(out)

    ref = reference_forward(s, params)
    assert out.shape == (batch, num_actions)
    # log-probs must exponentiate-sum to 1 along actions (padded mass underflows to 0).
    assert jnp.allclose(jnp.sum(jnp.exp(out), axis=-1), 1.0, atol=1e-4)
    # bf16 matmul operands vs f32 reference: loose absolute tolerance.
    assert jnp.allclose(out, ref, atol=5e-2, rtol=0.0), (out, ref)

    # Low-HBM-traffic path: bf16 log-prob output (use when downstream tolerates it).
    out_bf16 = average_policy_forward(s, *flat_layer_params, num_actions=num_actions,
                                      out_dtype=jnp.bfloat16)
    out_bf16 = jax.block_until_ready(out_bf16).astype(jnp.float32)
    assert out_bf16.shape == (batch, num_actions)
    assert jnp.allclose(out_bf16, ref, atol=7e-2, rtol=0.0), (out_bf16, ref)

    print("KERNEL_OK")
</pallas_src>

<mosaic_0001>
module attributes {stable_mosaic.version = 11 : i64} {
  func.func @kernel(%arg0: i32, %arg1: memref<8x64xbf16, #tpu.memory_space<vmem>>, %arg2: memref<64x128xbf16, #tpu.memory_space<vmem>>, %arg3: memref<1x128xf32, #tpu.memory_space<vmem>>, %arg4: memref<128x128xbf16, #tpu.memory_space<vmem>>, %arg5: memref<1x128xf32, #tpu.memory_space<vmem>>, %arg6: memref<128x128xbf16, #tpu.memory_space<vmem>>, %arg7: memref<1x128xf32, #tpu.memory_space<vmem>>, %arg8: memref<8x128xf32, #tpu.memory_space<vmem>>) attributes {dimension_semantics = [#tpu.dimension_semantics<parallel>], iteration_bounds = array<i64: 1>, scalar_prefetch = 0 : i64, scratch_operands = 0 : i64, tpu.core_type = #tpu.core_type<tc>, window_params = [{transform_indices = @transform_0, window_bounds = array<i64: 8, 64>}, {pipeline_mode = #tpu.pipeline_mode<synchronous>, transform_indices = @transform_1, window_bounds = array<i64: 64, 128>}, {pipeline_mode = #tpu.pipeline_mode<synchronous>, transform_indices = @transform_2, window_bounds = array<i64: 1, 128>}, {pipeline_mode = #tpu.pipeline_mode<synchronous>, transform_indices = @transform_3, window_bounds = array<i64: 128, 128>}, {pipeline_mode = #tpu.pipeline_mode<synchronous>, transform_indices = @transform_4, window_bounds = array<i64: 1, 128>}, {pipeline_mode = #tpu.pipeline_mode<synchronous>, transform_indices = @transform_5, window_bounds = array<i64: 128, 128>}, {pipeline_mode = #tpu.pipeline_mode<synchronous>, transform_indices = @transform_6, window_bounds = array<i64: 1, 128>}, {transform_indices = @transform_7, window_bounds = array<i64: 8, 128>}]} {
    %c0 = arith.constant 0 : index
    %c0_0 = arith.constant 0 : index
    %0 = vector.load %arg1[%c0, %c0_0] : memref<8x64xbf16, #tpu.memory_space<vmem>>, vector<8x64xbf16>
    %c0_1 = arith.constant 0 : index
    %c0_2 = arith.constant 0 : index
    %1 = vector.load %arg2[%c0_1, %c0_2] : memref<64x128xbf16, #tpu.memory_space<vmem>>, vector<64x128xbf16>
    %c0_3 = arith.constant 0 : index
    %c0_4 = arith.constant 0 : index
    %2 = vector.load %arg3[%c0_3, %c0_4] : memref<1x128xf32, #tpu.memory_space<vmem>>, vector<1x128xf32>
    %cst = arith.constant dense<0.000000e+00> : vector<8x128xf32>
    %3 = tpu.matmul %0, %1, %cst {dimension_numbers = #tpu.dot_dimension_numbers<[1], [0], [0], [1], [0, 0, 1, 1], [], []>} : vector<8x64xbf16>, vector<64x128xbf16>, vector<8x128xf32> -> vector<8x128xf32>
    %4 = vector.broadcast %2 : vector<1x128xf32> to vector<8x128xf32>
    %5 = arith.addf %3, %4 : vector<8x128xf32>
    %cst_5 = arith.constant 0.000000e+00 : f32
    %6 = vector.broadcast %cst_5 : f32 to vector<8x128xf32>
    %7 = arith.maximumf %5, %6 : vector<8x128xf32>
    %8 = arith.truncf %7 : vector<8x128xf32> to vector<8x128xbf16>
    %c0_6 = arith.constant 0 : index
    %c0_7 = arith.constant 0 : index
    %9 = vector.load %arg4[%c0_6, %c0_7] : memref<128x128xbf16, #tpu.memory_space<vmem>>, vector<128x128xbf16>
    %c0_8 = arith.constant 0 : index
    %c0_9 = arith.constant 0 : index
    %10 = vector.load %arg5[%c0_8, %c0_9] : memref<1x128xf32, #tpu.memory_space<vmem>>, vector<1x128xf32>
    %cst_10 = arith.constant dense<0.000000e+00> : vector<8x128xf32>
    %11 = tpu.matmul %8, %9, %cst_10 {dimension_numbers = #tpu.dot_dimension_numbers<[1], [0], [0], [1], [0, 0, 1, 1], [], []>} : vector<8x128xbf16>, vector<128x128xbf16>, vector<8x128xf32> -> vector<8x128xf32>
    %12 = vector.broadcast %10 : vector<1x128xf32> to vector<8x128xf32>
    %13 = arith.addf %11, %12 : vector<8x128xf32>
    %cst_11 = arith.constant 0.000000e+00 : f32
    %14 = vector.broadcast %cst_11 : f32 to vector<8x128xf32>
    %15 = arith.maximumf %13, %14 : vector<8x128xf32>
    %16 = arith.truncf %15 : vector<8x128xf32> to vector<8x128xbf16>
    %c0_12 = arith.constant 0 : index
    %c0_13 = arith.constant 0 : index
    %17 = vector.load %arg6[%c0_12, %c0_13] : memref<128x128xbf16, #tpu.memory_space<vmem>>, vector<128x128xbf16>
    %c0_14 = arith.constant 0 : index
    %c0_15 = arith.constant 0 : index
    %18 = vector.load %arg7[%c0_14, %c0_15] : memref<1x128xf32, #tpu.memory_space<vmem>>, vector<1x128xf32>
    %cst_16 = arith.constant dense<0.000000e+00> : vector<8x128xf32>
    %19 = tpu.matmul %16, %17, %cst_16 {dimension_numbers = #tpu.dot_dimension_numbers<[1], [0], [0], [1], [0, 0, 1, 1], [], []>} : vector<8x128xbf16>, vector<128x128xbf16>, vector<8x128xf32> -> vector<8x128xf32>
    %20 = vector.broadcast %18 : vector<1x128xf32> to vector<8x128xf32>
    %21 = arith.addf %19, %20 : vector<8x128xf32>
    %cst_17 = arith.constant dense<0xFF800000> : vector<8xf32>
    %22 = vector.multi_reduction <maximumf>, %21, %cst_17 [1] : vector<8x128xf32> to vector<8xf32>
    %23 = vector.shape_cast %22 : vector<8xf32> to vector<8x1xf32>
    %24 = vector.broadcast %23 : vector<8x1xf32> to vector<8x128xf32>
    %25 = arith.subf %21, %24 : vector<8x128xf32>
    %26 = math.exp %25 : vector<8x128xf32>
    %cst_18 = arith.constant dense<0.000000e+00> : vector<8xf32>
    %27 = vector.multi_reduction <add>, %26, %cst_18 [1] : vector<8x128xf32> to vector<8xf32>
    %28 = vector.shape_cast %27 : vector<8xf32> to vector<8x1xf32>
    %29 = math.log %28 : vector<8x1xf32>
    %30 = vector.broadcast %29 : vector<8x1xf32> to vector<8x128xf32>
    %31 = arith.subf %25, %30 : vector<8x128xf32>
    %c0_19 = arith.constant 0 : index
    %c0_20 = arith.constant 0 : index
    %32 = vector.load %arg8[%c0_19, %c0_20] : memref<8x128xf32, #tpu.memory_space<vmem>>, vector<8x128xf32>
    tpu.vector_store %arg8[%c0_19, %c0_20], %31 {strides = array<i32>} : memref<8x128xf32, #tpu.memory_space<vmem>>, vector<8x128xf32>,
    return
  }
  func.func @transform_0(%arg0: i32) -> (i32, i32) {
    %c0_i32 = arith.constant 0 : i32
    %c0_i32_0 = arith.constant 0 : i32
    return %arg0, %c0_i32 : i32, i32
  }
  func.func @transform_1(%arg0: i32) -> (i32, i32) {
    %c0_i32 = arith.constant 0 : i32
    %c0_i32_0 = arith.constant 0 : i32
    %c0_i32_1 = arith.constant 0 : i32
    return %c0_i32, %c0_i32_0 : i32, i32
  }
  func.func @transform_2(%arg0: i32) -> (i32, i32) {
    %c0_i32 = arith.constant 0 : i32
    %c0_i32_0 = arith.constant 0 : i32
    %c0_i32_1 = arith.constant 0 : i32
    return %c0_i32, %c0_i32_0 : i32, i32
  }
  func.func @transform_3(%arg0: i32) -> (i32, i32) {
    %c0_i32 = arith.constant 0 : i32
    %c0_i32_0 = arith.constant 0 : i32
    %c0_i32_1 = arith.constant 0 : i32
    return %c0_i32, %c0_i32_0 : i32, i32
  }
  func.func @transform_4(%arg0: i32) -> (i32, i32) {
    %c0_i32 = arith.constant 0 : i32
    %c0_i32_0 = arith.constant 0 : i32
    %c0_i32_1 = arith.constant 0 : i32
    return %c0_i32, %c0_i32_0 : i32, i32
  }
  func.func @transform_5(%arg0: i32) -> (i32, i32) {
    %c0_i32 = arith.constant 0 : i32
    %c0_i32_0 = arith.constant 0 : i32
    %c0_i32_1 = arith.constant 0 : i32
    return %c0_i32, %c0_i32_0 : i32, i32
  }
  func.func @transform_6(%arg0: i32) -> (i32, i32) {
    %c0_i32 = arith.constant 0 : i32
    %c0_i32_0 = arith.constant 0 : i32
    %c0_i32_1 = arith.constant 0 : i32
    return %c0_i32, %c0_i32_0 : i32, i32
  }
  func.func @transform_7(%arg0: i32) -> (i32, i32) {
    %c0_i32 = arith.constant 0 : i32
    %c0_i32_0 = arith.constant 0 : i32
    return %arg0, %c0_i32 : i32, i32
  }
}

</mosaic_0001>

<llo_original>
// kernel: average_policy_forward.1
$region0: #{average_policy_forward.1}
  #allocation0 [shape = 'u32[]', space=smem, size = 0x4, offset = 0x4, fixed_abs, tag = 'smem constant byte address 0x4 - core index']
  #allocation1 [shape = 'u32[144,128]{1,0:T(1,128)}', space=vmem, size = 0x12000, scoped, tag = 'internal scratch']
  %s0 = inlined_call_operand.vmem [shape: bf16[8,64], index: 0, kind: input, shape index: {}]
  %s1 = inlined_call_operand.hbm [shape: bf16[64,128], index: 1, kind: input, shape index: {}]
  %s2 = inlined_call_operand.vmem [shape: f32[1,128], index: 2, kind: input, shape index: {}]
  %s3 = inlined_call_operand.vmem [shape: bf16[128,128], index: 3, kind: input, shape index: {}]
  %s4 = inlined_call_operand.vmem [shape: f32[1,128], index: 4, kind: input, shape index: {}]
  %s5 = inlined_call_operand.hbm [shape: bf16[128,128], index: 5, kind: input, shape index: {}]
  %s6 = inlined_call_operand.vmem [shape: f32[1,128], index: 6, kind: input, shape index: {}]
  %s7 = inlined_call_operand.vmem [shape: f32[8,128], index: 7, kind: output, shape index: {}]
  %s8 = sld [smem:[#allocation0]]
  $region46: #{average_policy_forward.1} parent=0
    _
  %s10 = ssub.s32 1, %s8
  %s11 = scalar_select 0, %s10, %s8
  $region1: #{average_policy_forward.1} parent=0
    #allocation2 [shape = 'u8[16384]{0}', space=vmem, size = 0x4000, scoped, tag = 'input window, operand 1, single buffered']
    #allocation3 [shape = 's32[1]{0}', space=sflag, size = 0x4, scoped, tag = 'scoped memory for average_policy_forward.1']
    #allocation4 [shape = 'u8[32768]{0}', space=vmem, size = 0x8000, scoped, tag = 'input window, operand 5, single buffered']
    #allocation5 [shape = 's32[1]{0}', space=sflag, size = 0x4, scoped, tag = 'scoped memory for average_policy_forward.1']
    %12 = vsyncpa [#allocation3], 0
    %13 = vsyncpa [#allocation5], 0
    // Predicated region
    $region2: #{average_policy_forward.1} parent=1 // pred_check
      _
    $region3: #{average_policy_forward.1} parent=1 // pred_check_branch
      %15 = sbr.rel (0) target = $region5
    $region4: #{average_policy_forward.1} parent=1 // pred_region
      _
    $region5: #{average_policy_forward.1} parent=1 // pred_fallthru
      _
    // Predicated region
    $region6: #{average_policy_forward.1} parent=1 // pred_check
      _
    $region7: #{average_policy_forward.1} parent=1 // pred_check_branch
      %17 = sbr.rel (0) target = $region9
    $region8: #{average_policy_forward.1} parent=1 // pred_region
      %s19 = ssub.s32 512, 512
      %20 = vsyncadd [#allocation3], %s19
      %s21 = sshll.u32 [#allocation2], 4
      %s22 = int_to_ptr.vmem [resolvable:$true] %s21
      %27 = dma.hbm_to_vmem [thread:$0]  %s1, 512, %s22, [#allocation3], 64, 64, 4
    $region9: #{average_policy_forward.1} parent=1 // pred_fallthru
      _
    // Predicated region
    $region10: #{average_policy_forward.1} parent=1 // pred_check
      _
    $region11: #{average_policy_forward.1} parent=1 // pred_check_branch
      %29 = sbr.rel (0) target = $region13
    $region12: #{average_policy_forward.1} parent=1 // pred_region
      _
    $region13: #{average_policy_forward.1} parent=1 // pred_fallthru
      _
    // Predicated region
    $region14: #{average_policy_forward.1} parent=1 // pred_check
      _
    $region15: #{average_policy_forward.1} parent=1 // pred_check_branch
      %31 = sbr.rel (0) target = $region17
    $region16: #{average_policy_forward.1} parent=1 // pred_region
      _
    $region17: #{average_policy_forward.1} parent=1 // pred_fallthru
      _
    // Predicated region
    $region18: #{average_policy_forward.1} parent=1 // pred_check
      _
    $region19: #{average_policy_forward.1} parent=1 // pred_check_branch
      %33 = sbr.rel (0) target = $region21
    $region20: #{average_policy_forward.1} parent=1 // pred_region
      _
    $region21: #{average_policy_forward.1} parent=1 // pred_fallthru
      _
    // Predicated region
    $region22: #{average_policy_forward.1} parent=1 // pred_check
      _
    $region23: #{average_policy_forward.1} parent=1 // pred_check_branch
      %35 = sbr.rel (0) target = $region25
    $region24: #{average_policy_forward.1} parent=1 // pred_region
      %s37 = ssub.s32 1024, 1024
      %38 = vsyncadd [#allocation5], %s37
      %s39 = sshll.u32 [#allocation4], 4
      %s40 = int_to_ptr.vmem [resolvable:$true] %s39
      %45 = dma.hbm_to_vmem [thread:$0]  %s5, 1024, %s40, [#allocation5], 64, 64, 4
    $region25: #{average_policy_forward.1} parent=1 // pred_fallthru
      _
    // Predicated region
    $region26: #{average_policy_forward.1} parent=1 // pred_check
      _
    $region27: #{average_policy_forward.1} parent=1 // pred_check_branch
      %47 = sbr.rel (0) target = $region29
    $region28: #{average_policy_forward.1} parent=1 // pred_region
      _
    $region29: #{average_policy_forward.1} parent=1 // pred_fallthru
      _
    // Predicated region
    $region30: #{average_policy_forward.1} parent=1 // pred_check
      _
    $region31: #{average_policy_forward.1} parent=1 // pred_check_branch
      %49 = sbr.rel (0) target = $region33
    $region32: #{average_policy_forward.1} parent=1 // pred_region
      %50 = dma.done [#allocation3], 512
    $region33: #{average_policy_forward.1} parent=1 // pred_fallthru
      _
    // Predicated region
    $region34: #{average_policy_forward.1} parent=1 // pred_check
      _
    $region35: #{average_policy_forward.1} parent=1 // pred_check_branch
      %52 = sbr.rel (0) target = $region37
    $region36: #{average_policy_forward.1} parent=1 // pred_region
      %53 = dma.done [#allocation5], 1024
    $region37: #{average_policy_forward.1} parent=1 // pred_fallthru
      _
    %v55 = vld [vmem:[%s0] sm:$0xf]
    %v56 = vld [vmem:[#allocation2] sm:$0xf]
    %v57 = vld [vmem:[#allocation2 + $0x4] sm:$0xf]
    %v58 = vld [vmem:[#allocation2 + $0x8] sm:$0xf]
    %v59 = vld [vmem:[#allocation2 + $0xc] sm:$0xf]
    %v60 = vld [vmem:[#allocation2 + $0x10] sm:$0xf]
    %v61 = vld [vmem:[#allocation2 + $0x14] sm:$0xf]
    %v62 = vld [vmem:[#allocation2 + $0x18] sm:$0xf]
    %v63 = vld [vmem:[#allocation2 + $0x1c] sm:$0xf]
    %v64 = vld [vmem:[%s2] sm:$0x1]
    %v66 = vlaneseq
    %v67 = vshrl.u32 %v66, 7
    %v68 = vsub.s32 0, %v67
    %v69 = vrot.slane %v64, %v68
    %v79 = vunpack.c.l.b16 %v56
    %v80 = vunpack.c.l.b16 %v57
    %v81 = vunpack.c.l.b16 %v58
    %v82 = vunpack.c.l.b16 %v59
    %v83 = vunpack.c.l.b16 %v60
    %v84 = vunpack.c.l.b16 %v61
    %v85 = vunpack.c.l.b16 %v62
    %v86 = vunpack.c.l.b16 %v63
    %v87 = vpack.c.b16 %v80, %v79
    %v88 = vpack.c.b16 %v82, %v81
    %v89 = vpack.c.b16 %v84, %v83
    %v90 = vpack.c.b16 %v86, %v85
    %vm95 = vcmask 523264
    %v97 = vsel %vm95, %v55, 0
    %99 = vmatprep.subr.bf16.mxu0 0
    %100 = vmatpush1.bf16.msra.mxu0 0
    %101 = vmatprep.subr.bf16.mxu0 0
    %102 = vmatpush1.bf16.msra.mxu0 0
    %103 = vmatprep.subr.bf16.mxu0 0
    %104 = vmatpush1.bf16.msra.mxu0 0
    %105 = vmatprep.subr.bf16.mxu0 0
    %106 = vmatpush1.bf16.msra.mxu0 0
    %107 = vmatprep.subr.bf16.mxu0 0
    %108 = vmatpush1.bf16.msra.mxu0 %v90
    %109 = vmatprep.subr.bf16.mxu0 0
    %110 = vmatpush1.bf16.msra.mxu0 %v89
    %111 = vmatprep.subr.bf16.mxu0 0
    %112 = vmatpush1.bf16.msra.mxu0 %v88
    %113 = vmatprep.subr.bf16.mxu0 0
    %114 = vmatpush1.bf16.msra.mxu0 %v87
    %115 = vmatprep.subr.bf16.mxu0 0
    %116 = vmatpush2.bf16.msra.mxu0 0
    %117 = vmatprep.subr.bf16.mxu0 0
    %118 = vmatpush2.bf16.msra.mxu0 0
    %119 = vmatprep.subr.bf16.mxu0 0
    %120 = vmatpush2.bf16.msra.mxu0 0
    %121 = vmatprep.subr.bf16.mxu0 0
    %122 = vmatpush2.bf16.msra.mxu0 0
    %123 = vmatprep.subr.bf16.mxu0 0
    %124 = vmatpush2.bf16.msra.mxu0 0
    %125 = vmatprep.subr.bf16.mxu0 0
    %126 = vmatpush2.bf16.msra.mxu0 0
    %127 = vmatprep.subr.bf16.mxu0 0
    %128 = vmatpush2.bf16.msra.mxu0 0
    %129 = vmatprep.subr.bf16.mxu0 0
    %130 = vmatpush2.bf16.msra.mxu0 0
    %131 = vmatprep.mubr.bf16.mxu0 0
    %132 = vmatmul.mubr.bf16.gmra.mxu0 %v97
    %v133 = vpop.f32.mrf.mxu0
    %v134 = vadd.f32 %v69, %v133
    %v135 = vpop.f32.mrf.mxu0
    %v136 = vpop.f32.mrf.mxu0
    %v137 = vpop.f32.mrf.mxu0
    %138 = vdwg.mxu0
    %v139 = vmax.f32 %v134, 0.0
    %v140 = vpack.c.bf16 %v139, %v139
    %v141 = vld [vmem:[%s3] sm:$0xf]
    %v142 = vld [vmem:[%s3 + $0x4] sm:$0xf]
    %v143 = vld [vmem:[%s3 + $0x8] sm:$0xf]
    %v144 = vld [vmem:[%s3 + $0xc] sm:$0xf]
    %v145 = vld [vmem:[%s3 + $0x10] sm:$0xf]
    %v146 = vld [vmem:[%s3 + $0x14] sm:$0xf]
    %v147 = vld [vmem:[%s3 + $0x18] sm:$0xf]
    %v148 = vld [vmem:[%s3 + $0x1c] sm:$0xf]
    %v149 = vld [vmem:[%s3 + $0x20] sm:$0xf]
    %v150 = vld [vmem:[%s3 + $0x24] sm:$0xf]
    %v151 = vld [vmem:[%s3 + $0x28] sm:$0xf]
    %v152 = vld [vmem:[%s3 + $0x2c] sm:$0xf]
    %v153 = vld [vmem:[%s3 + $0x30] sm:$0xf]
    %v154 = vld [vmem:[%s3 + $0x34] sm:$0xf]
    %v155 = vld [vmem:[%s3 + $0x38] sm:$0xf]
    %v156 = vld [vmem:[%s3 + $0x3c] sm:$0xf]
    %v157 = vld [vmem:[%s4] sm:$0x1]
    %v159 = vlaneseq
    %v160 = vshrl.u32 %v159, 7
    %v161 = vsub.s32 0, %v160
    %v162 = vrot.slane %v157, %v161
    %v180 = vunpack.c.l.b16 %v141
    %v181 = vunpack.c.l.b16 %v142
    %v182 = vunpack.c.l.b16 %v143
    %v183 = vunpack.c.l.b16 %v144
    %v184 = vunpack.c.l.b16 %v145
    %v185 = vunpack.c.l.b16 %v146
    %v186 = vunpack.c.l.b16 %v147
    %v187 = vunpack.c.l.b16 %v148
    %v188 = vunpack.c.l.b16 %v149
    %v189 = vunpack.c.l.b16 %v150
    %v190 = vunpack.c.l.b16 %v151
    %v191 = vunpack.c.l.b16 %v152
    %v192 = vunpack.c.l.b16 %v153
    %v193 = vunpack.c.l.b16 %v154
    %v194 = vunpack.c.l.b16 %v155
    %v195 = vunpack.c.l.b16 %v156
    %v196 = vpack.c.b16 %v181, %v180
    %v197 = vpack.c.b16 %v183, %v182
    %v198 = vpack.c.b16 %v185, %v184
    %v199 = vpack.c.b16 %v187, %v186
    %v200 = vpack.c.b16 %v189, %v188
    %v201 = vpack.c.b16 %v191, %v190
    %v202 = vpack.c.b16 %v193, %v192
    %v203 = vpack.c.b16 %v195, %v194
    %212 = vmatprep.subr.bf16.mxu0 0
    %213 = vmatpush1.bf16.msra.mxu0 %v203
    %214 = vmatprep.subr.bf16.mxu0 0
    %215 = vmatpush1.bf16.msra.mxu0 %v202
    %216 = vmatprep.subr.bf16.mxu0 0
    %217 = vmatpush1.bf16.msra.mxu0 %v201
    %218 = vmatprep.subr.bf16.mxu0 0
    %219 = vmatpush1.bf16.msra.mxu0 %v200
    %220 = vmatprep.subr.bf16.mxu0 0
    %221 = vmatpush1.bf16.msra.mxu0 %v199
    %222 = vmatprep.subr.bf16.mxu0 0
    %223 = vmatpush1.bf16.msra.mxu0 %v198
    %224 = vmatprep.subr.bf16.mxu0 0
    %225 = vmatpush1.bf16.msra.mxu0 %v197
    %226 = vmatprep.subr.bf16.mxu0 0
    %227 = vmatpush1.bf16.msra.mxu0 %v196
    %228 = vmatprep.subr.bf16.mxu0 0
    %229 = vmatpush2.bf16.msra.mxu0 0
    %230 = vmatprep.subr.bf16.mxu0 0
    %231 = vmatpush2.bf16.msra.mxu0 0
    %232 = vmatprep.subr.bf16.mxu0 0
    %233 = vmatpush2.bf16.msra.mxu0 0
    %234 = vmatprep.subr.bf16.mxu0 0
    %235 = vmatpush2.bf16.msra.mxu0 0
    %236 = vmatprep.subr.bf16.mxu0 0
    %237 = vmatpush2.bf16.msra.mxu0 0
    %238 = vmatprep.subr.bf16.mxu0 0
    %239 = vmatpush2.bf16.msra.mxu0 0
    %240 = vmatprep.subr.bf16.mxu0 0
    %241 = vmatpush2.bf16.msra.mxu0 0
    %242 = vmatprep.subr.bf16.mxu0 0
    %243 = vmatpush2.bf16.msra.mxu0 0
    %244 = vmatprep.mubr.bf16.mxu0 0
    %245 = vmatmul.mubr.bf16.gmra.mxu0 %v140
    %v246 = vpop.f32.mrf.mxu0
    %v247 = vadd.f32 %v162, %v246
    %v248 = vpop.f32.mrf.mxu0
    %v249 = vpop.f32.mrf.mxu0
    %v250 = vpop.f32.mrf.mxu0
    %251 = vdwg.mxu0
    %v252 = vmax.f32 %v247, 0.0
    %v253 = vpack.c.bf16 %v252, %v252
    %v254 = vld [vmem:[#allocation4] sm:$0xf]
    %v255 = vld [vmem:[#allocation4 + $0x4] sm:$0xf]
    %v256 = vld [vmem:[#allocation4 + $0x8] sm:$0xf]
    %v257 = vld [vmem:[#allocation4 + $0xc] sm:$0xf]
    %v258 = vld [vmem:[#allocation4 + $0x10] sm:$0xf]
    %v259 = vld [vmem:[#allocation4 + $0x14] sm:$0xf]
    %v260 = vld [vmem:[#allocation4 + $0x18] sm:$0xf]
    %v261 = vld [vmem:[#allocation4 + $0x1c] sm:$0xf]
    %v262 = vld [vmem:[#allocation4 + $0x20] sm:$0xf]
    %v263 = vld [vmem:[#allocation4 + $0x24] sm:$0xf]
    %v264 = vld [vmem:[#allocation4 + $0x28] sm:$0xf]
    %v265 = vld [vmem:[#allocation4 + $0x2c] sm:$0xf]
    %v266 = vld [vmem:[#allocation4 + $0x30] sm:$0xf]
    %v267 = vld [vmem:[#allocation4 + $0x34] sm:$0xf]
    %v268 = vld [vmem:[#allocation4 + $0x38] sm:$0xf]
    %v269 = vld [vmem:[#allocation4 + $0x3c] sm:$0xf]
    %v270 = vld [vmem:[%s6] sm:$0x1]
    %v272 = vlaneseq
    %v273 = vshrl.u32 %v272, 7
    %v274 = vsub.s32 0, %v273
    %v275 = vrot.slane %v270, %v274
    %v293 = vunpack.c.l.b16 %v254
    %v294 = vunpack.c.l.b16 %v255
    %v295 = vunpack.c.l.b16 %v256
    %v296 = vunpack.c.l.b16 %v257
    %v297 = vunpack.c.l.b16 %v258
    %v298 = vunpack.c.l.b16 %v259
    %v299 = vunpack.c.l.b16 %v260
    %v300 = vunpack.c.l.b16 %v261
    %v301 = vunpack.c.l.b16 %v262
    %v302 = vunpack.c.l.b16 %v263
    %v303 = vunpack.c.l.b16 %v264
    %v304 = vunpack.c.l.b16 %v265
    %v305 = vunpack.c.l.b16 %v266
    %v306 = vunpack.c.l.b16 %v267
    %v307 = vunpack.c.l.b16 %v268
    %v308 = vunpack.c.l.b16 %v269
    %v309 = vpack.c.b16 %v294, %v293
    %v310 = vpack.c.b16 %v296, %v295
    %v311 = vpack.c.b16 %v298, %v297
    %v312 = vpack.c.b16 %v300, %v299
    %v313 = vpack.c.b16 %v302, %v301
    %v314 = vpack.c.b16 %v304, %v303
    %v315 = vpack.c.b16 %v306, %v305
    %v316 = vpack.c.b16 %v308, %v307
    %325 = vmatprep.subr.bf16.mxu0 0
    %326 = vmatpush1.bf16.msra.mxu0 %v316
    %327 = vmatprep.subr.bf16.mxu0 0
    %328 = vmatpush1.bf16.msra.mxu0 %v315
    %329 = vmatprep.subr.bf16.mxu0 0
    %330 = vmatpush1.bf16.msra.mxu0 %v314
    %331 = vmatprep.subr.bf16.mxu0 0
    %332 = vmatpush1.bf16.msra.mxu0 %v313
    %333 = vmatprep.subr.bf16.mxu0 0
    %334 = vmatpush1.bf16.msra.mxu0 %v312
    %335 = vmatprep.subr.bf16.mxu0 0
    %336 = vmatpush1.bf16.msra.mxu0 %v311
    %337 = vmatprep.subr.bf16.mxu0 0
    %338 = vmatpush1.bf16.msra.mxu0 %v310
    %339 = vmatprep.subr.bf16.mxu0 0
    %340 = vmatpush1.bf16.msra.mxu0 %v309
    %341 = vmatprep.subr.bf16.mxu0 0
    %342 = vmatpush2.bf16.msra.mxu0 0
    %343 = vmatprep.subr.bf16.mxu0 0
    %344 = vmatpush2.bf16.msra.mxu0 0
    %345 = vmatprep.subr.bf16.mxu0 0
    %346 = vmatpush2.bf16.msra.mxu0 0
    %347 = vmatprep.subr.bf16.mxu0 0
    %348 = vmatpush2.bf16.msra.mxu0 0
    %349 = vmatprep.subr.bf16.mxu0 0
    %350 = vmatpush2.bf16.msra.mxu0 0
    %351 = vmatprep.subr.bf16.mxu0 0
    %352 = vmatpush2.bf16.msra.mxu0 0
    %353 = vmatprep.subr.bf16.mxu0 0
    %354 = vmatpush2.bf16.msra.mxu0 0
    %355 = vmatprep.subr.bf16.mxu0 0
    %356 = vmatpush2.bf16.msra.mxu0 0
    %357 = vmatprep.mubr.bf16.mxu0 0
    %358 = vmatmul.mubr.bf16.gmra.mxu0 %v253
    %v359 = vpop.f32.mrf.mxu0
    %v360 = vadd.f32 %v275, %v359
    %v361 = vpop.f32.mrf.mxu0
    %v362 = vpop.f32.mrf.mxu0
    %v363 = vpop.f32.mrf.mxu0
    %364 = vdwg.mxu0
    %365 = vmax.xlane.f32.xlu0 %v360
    %v366 = vpop.xlane.xlu0 %365
    %v367 = vsub.f32 %v360, %v366
    %v368 = vmul.f32 %v367, 1.442695
    %v369 = vpow.pop %v368
    %370 = vadd.xlane.f32.xlu0 %v369
    %v371 = vpop.xlane.xlu0 %370
    %v372 = vlog2.pop %v371
    %v373 = vmul.f32 %v372, 0.6931472
    %v374 = vsub.f32 %v367, %v373
    %375 = vst [vmem:[%s7] sm:$0xff] %v374
    // Predicated region
    $region38: #{average_policy_forward.1} parent=1 // pred_check
      _
    $region39: #{average_policy_forward.1} parent=1 // pred_check_branch
      %377 = sbr.rel (0) target = $region41
    $region40: #{average_policy_forward.1} parent=1 // pred_region
      _
    $region41: #{average_policy_forward.1} parent=1 // pred_fallthru
      _
    // Predicated region
    $region42: #{average_policy_forward.1} parent=1 // pred_check
      _
    $region43: #{average_policy_forward.1} parent=1 // pred_check_branch
      %379 = sbr.rel (0) target = $region45
    $region44: #{average_policy_forward.1} parent=1 // pred_region
      _
    $region45: #{average_policy_forward.1} parent=1 // pred_fallthru
      _
    %380 = vsyncpa [#allocation3], 1
    %381 = vsyncpa [#allocation5], 1

</llo_original>
